<compile_context>
chip_gen: v6e
topology: v6e:2x2x1
jax: 0.10.0
libtpu: 0.0.40
codegen_flags: <defaults>
</compile_context>

<pallas_src>
import jax
import jax.numpy as jnp
from jax import lax
from jax.experimental import pallas as pl
from jax.experimental.pallas import tpu as pltpu


def _round_up(x, m):
    return ((x + m - 1) // m) * m


def _round_down(x, m):
    return (x // m) * m


def _make_kernel(*, block_rows, lanes, blocks_per_part, n_blocks, needs_mask,
                 has_overflow, full_rows, tail, has_min, has_max):
    has_penalty = has_min or has_max
    last_blk = n_blocks - 1

    def accumulate(p_ref, t_ref, params_ref, acc_abs, acc_sq, acc_pen, masked):
        p = p_ref[...].astype(jnp.float32)
        t = t_ref[...].astype(jnp.float32)
        d = p - t
        abs_d = jnp.abs(d)
        sq_d = d * d
        if has_penalty:
            pen = jnp.zeros_like(p)
            if has_min:
                pen = pen + jnp.maximum(params_ref[1] - p, 0.0)
            if has_max:
                pen = pen + jnp.maximum(p - params_ref[2], 0.0)
        if masked:
            # Only the globally-last block can hold invalid elements (array tail pad
            # and/or rows past the valid range); select-out their contribution.
            rows = (lax.broadcasted_iota(jnp.int32, (block_rows, lanes), 0)
                    + last_blk * block_rows)
            valid = rows < full_rows
            if tail:
                lane_id = lax.broadcasted_iota(jnp.int32, (block_rows, lanes), 1)
                valid = valid | ((rows == full_rows) & (lane_id < tail))
            abs_d = jnp.where(valid, abs_d, 0.0)
            sq_d = jnp.where(valid, sq_d, 0.0)
            if has_penalty:
                pen = jnp.where(valid, pen, 0.0)
        # vreg-shaped partial sums: pure sublane-aligned VALU adds; the single
        # cross-sublane/lane collapse happens in the wrapper's tiny final reduce.
        acc_abs[...] += abs_d.reshape(-1, 8, lanes).sum(axis=0)
        acc_sq[...] += sq_d.reshape(-1, 8, lanes).sum(axis=0)
        if has_penalty:
            acc_pen[...] += pen.reshape(-1, 8, lanes).sum(axis=0)

    def kernel(params_ref, p_ref, t_ref, o_ref, acc_abs, acc_sq, acc_pen):
        # params_ref (SMEM, f32[5]): [alpha, min_c, max_c, 1/N, penalty_weight]
        i = pl.program_id(0)                # parallel slice (megacore axis)
        j = pl.program_id(1)                # sequential reduction axis
        gblk = i * blocks_per_part + j      # global row-block index

        @pl.when(j == 0)
        def _init():
            acc_abs[...] = jnp.zeros_like(acc_abs)
            acc_sq[...] = jnp.zeros_like(acc_sq)
            if has_penalty:
                acc_pen[...] = jnp.zeros_like(acc_pen)

        if needs_mask:
            @pl.when(gblk < last_blk)
            def _full():
                accumulate(p_ref, t_ref, params_ref, acc_abs, acc_sq, acc_pen,
                           masked=False)

            @pl.when(gblk == last_blk)
            def _partial():
                accumulate(p_ref, t_ref, params_ref, acc_abs, acc_sq, acc_pen,
                           masked=True)
        elif has_overflow:
            @pl.when(gblk < n_blocks)
            def _guarded():
                accumulate(p_ref, t_ref, params_ref, acc_abs, acc_sq, acc_pen,
                           masked=False)
        else:
            accumulate(p_ref, t_ref, params_ref, acc_abs, acc_sq, acc_pen,
                       masked=False)

        @pl.when(j == blocks_per_part - 1)
        def _finalize():
            alpha = jnp.clip(params_ref[0], 1e-6, 1.0)
            inv_n = params_ref[3]
            combined = ((alpha * inv_n) * acc_abs[...]
                        + ((1.0 - alpha) * inv_n) * acc_sq[...])
            if has_penalty:
                combined = combined + params_ref[4] * acc_pen[...]
            o_ref[...] = combined.reshape(1, 8, lanes).astype(o_ref.dtype)

    return kernel


def trainable_l1l2_loss(preds, targets, alpha, min_constraint, max_constraint,
                        penalty_weight=0.5, *, block_rows=None, lanes=128):
    """Fused TrainableL1L2Loss.forward. preds/targets: same shape, any rank."""
    assert preds.shape == targets.shape
    n = int(preds.size)
    assert n > 0

    has_min = min_constraint is not None
    has_max = max_constraint is not None
    has_penalty = has_min or has_max

    # Native dtype straight into the kernel (no wrapper f32 upcast -> no extra HBM pass).
    p = preds.reshape(-1)
    t = targets.reshape(-1)
    p_bytes = jnp.dtype(p.dtype).itemsize
    t_bytes = jnp.dtype(t.dtype).itemsize

    # Minimal lane pad only (guarded; <= max(1023,127) elements, never a full-block pad).
    arr_rows = max(-(-n // lanes), 8)
    padded_n = arr_rows * lanes
    if padded_n != n:
        p = jnp.pad(p, (0, padded_n - n))
        t = jnp.pad(t, (0, padded_n - n))
    p = p.reshape(arr_rows, lanes)
    t = t.reshape(arr_rows, lanes)

    # Sublane multiple per dtype (f32:8, bf16:16, int8/fp8:32).
    mult = max(8 * (4 // max(p_bytes, 1)), 8 * (4 // max(t_bytes, 1)), 8)
    if block_rows is None:
        # ~1 MiB per input block.
        block_rows = max((1 << 20) // (lanes * max(min(p_bytes, t_bytes), 1)), mult)
    br = max(_round_up(int(block_rows), 8), 8)
    br = min(br, _round_down(arr_rows, 8))
    if br >= mult:
        br = _round_down(br, mult)
    block_rows = br

    n_blocks = -(-arr_rows // block_rows)
    n_parallel = 2 if n_blocks >= 2 else 1          # v7x: both TCs stream HBM
    blocks_per_part = -(-n_blocks // n_parallel)
    has_overflow = (n_parallel * blocks_per_part != n_blocks)
    needs_mask = (n_blocks * block_rows * lanes != n)
    full_rows = n // lanes
    tail = n % lanes

    params = jnp.stack([
        jnp.asarray(alpha, jnp.float32).reshape(()),
        jnp.asarray(min_constraint if has_min else 0.0, jnp.float32).reshape(()),
        jnp.asarray(max_constraint if has_max else 0.0, jnp.float32).reshape(()),
        jnp.asarray(1.0 / n, jnp.float32).reshape(()),
        jnp.asarray(penalty_weight, jnp.float32).reshape(()),
    ])

    if has_overflow:
        def in_map(i, j):
            # Clamp overflow steps of the parallel split onto the last valid block;
            # their contribution is skipped inside the kernel.
            return (jnp.minimum(i * blocks_per_part + j, n_blocks - 1), 0)
    else:
        def in_map(i, j):
            return (i * blocks_per_part + j, 0)

    kernel = _make_kernel(block_rows=block_rows, lanes=lanes,
                          blocks_per_part=blocks_per_part, n_blocks=n_blocks,
                          needs_mask=needs_mask, has_overflow=has_overflow,
                          full_rows=full_rows, tail=tail,
                          has_min=has_min, has_max=has_max)

    # Raise the scoped-VMEM limit only when big tiles would exceed v5e's 16 MiB default.
    in_buf_bytes = 2 * block_rows * lanes * (p_bytes + t_bytes)   # double-buffered inputs
    vmem_limit = int(in_buf_bytes + (4 << 20)) if in_buf_bytes > 12 * 1024 * 1024 else None

    flops_per_elem = 5 + (4 if has_penalty else 0)
    cost = pl.CostEstimate(
        flops=int(flops_per_elem * n),
        transcendentals=0,
        bytes_accessed=int(n * (p_bytes + t_bytes)
                           + n_parallel * 8 * lanes * 4 + 5 * 4))

    partials = pl.pallas_call(
        kernel,
        out_shape=jax.ShapeDtypeStruct((n_parallel, 8, lanes), jnp.float32),
        grid_spec=pltpu.PrefetchScalarGridSpec(
            num_scalar_prefetch=0,
            grid=(n_parallel, blocks_per_part),
            in_specs=[
                pl.BlockSpec(memory_space=pltpu.MemorySpace.SMEM),   # params f32[5]
                pl.BlockSpec((block_rows, lanes), in_map),           # preds
                pl.BlockSpec((block_rows, lanes), in_map),           # targets
            ],
            out_specs=pl.BlockSpec((1, 8, lanes), lambda i, j: (i, 0, 0)),
            scratch_shapes=[
                pltpu.VMEM((8, lanes), jnp.float32),   # sum |d|
                pltpu.VMEM((8, lanes), jnp.float32),   # sum d^2
                pltpu.VMEM((8, lanes), jnp.float32),   # box penalty
            ],
        ),
        compiler_params=pltpu.CompilerParams(
            dimension_semantics=("parallel", "arbitrary"),
            vmem_limit_bytes=vmem_limit),
        cost_estimate=cost,
    )(params, p, t)

    # Each slice already emitted an alpha/inv_n/pw-combined partial; the final
    # collapse is a tiny (n_parallel*8*128) XLA reduce.
    return jnp.sum(partials)


def _ref_loss(preds, targets, alpha, mn, mx, pw):
    a = jnp.clip(jnp.float32(alpha), 1e-6, 1.0)
    d = preds.astype(jnp.float32) - targets.astype(jnp.float32)
    l1 = jnp.mean(jnp.abs(d))
    l2 = jnp.mean(d * d)
    pen = jnp.float32(0.0)
    pf = preds.astype(jnp.float32)
    if mn is not None:
        pen = pen + jnp.sum(jnp.maximum(mn - pf, 0.0))
    if mx is not None:
        pen = pen + jnp.sum(jnp.maximum(pf - mx, 0.0))
    return a * l1 + (1.0 - a) * l2 + pw * pen


if __name__ == "__main__":
    key = jax.random.PRNGKey(0)
    kp, kt = jax.random.split(key)

    initial_alpha = 0.5
    min_constraint = -1.0
    max_constraint = 1.0
    penalty_weight = 0.5     # box_constraint_coeff

    # Small standardized-label-shaped tensors: (batch, n_elem).
    preds = jax.random.normal(kp, (16, 128), dtype=jnp.float32)
    targets = jax.random.normal(kt, (16, 128), dtype=jnp.float32)

    # 1) multi-step accumulation + 2-slice parallel split (block_rows=8 at toy size).
    loss = jax.block_until_ready(
        trainable_l1l2_loss(preds, targets, initial_alpha, min_constraint,
                            max_constraint, penalty_weight, block_rows=8))
    ref = _ref_loss(preds, targets, initial_alpha, min_constraint,
                    max_constraint, penalty_weight)
    assert jnp.allclose(loss, ref, rtol=1e-5, atol=1e-5), (loss, ref)

    # 2) ragged size (n not a multiple of 128) -> in-kernel masked tail.
    p2 = jax.random.normal(jax.random.PRNGKey(1), (5, 37), dtype=jnp.float32)
    t2 = jax.random.normal(jax.random.PRNGKey(2), (5, 37), dtype=jnp.float32)
    loss2 = jax.block_until_ready(
        trainable_l1l2_loss(p2, t2, 0.3, -0.5, 0.75, penalty_weight))
    ref2 = _ref_loss(p2, t2, 0.3, -0.5, 0.75, penalty_weight)
    assert jnp.allclose(loss2, ref2, rtol=1e-5, atol=1e-5), (loss2, ref2)

    # 3) no-constraint specialization (penalty path removed at trace time).
    loss3 = jax.block_until_ready(
        trainable_l1l2_loss(preds, targets, 0.7, None, None, penalty_weight))
    ref3 = _ref_loss(preds, targets, 0.7, None, None, penalty_weight)
    assert jnp.allclose(loss3, ref3, rtol=1e-5, atol=1e-5), (loss3, ref3)

    # 4) odd block count -> overflow step of the parallel split (clamped + skipped).
    p4 = jax.random.normal(jax.random.PRNGKey(3), (24, 128), dtype=jnp.float32)
    t4 = jax.random.normal(jax.random.PRNGKey(4), (24, 128), dtype=jnp.float32)
    loss4 = jax.block_until_ready(
        trainable_l1l2_loss(p4, t4, initial_alpha, min_constraint,
                            max_constraint, penalty_weight, block_rows=8))
    ref4 = _ref_loss(p4, t4, initial_alpha, min_constraint,
                     max_constraint, penalty_weight)
    assert jnp.allclose(loss4, ref4, rtol=1e-5, atol=1e-5), (loss4, ref4)

    print("KERNEL_OK")
</pallas_src>

<mosaic_0001>
module attributes {stable_mosaic.version = 11 : i64} {
  func.func @kernel(%arg0: i32, %arg1: i32, %arg2: memref<5xf32, #tpu.memory_space<smem>>, %arg3: memref<8x128xf32, #tpu.memory_space<vmem>>, %arg4: memref<8x128xf32, #tpu.memory_space<vmem>>, %arg5: memref<1x8x128xf32, #tpu.memory_space<vmem>>, %arg6: memref<8x128xf32, #tpu.memory_space<vmem>>, %arg7: memref<8x128xf32, #tpu.memory_space<vmem>>, %arg8: memref<8x128xf32, #tpu.memory_space<vmem>>) attributes {dimension_semantics = [#tpu.dimension_semantics<parallel>, #tpu.dimension_semantics<arbitrary>], iteration_bounds = array<i64: 2, 1>, scalar_prefetch = 0 : i64, scratch_operands = 3 : i64, tpu.core_type = #tpu.core_type<tc>, window_params = [{transform_indices = @transform_0, window_bounds = array<i64: 5>}, {transform_indices = @transform_1, window_bounds = array<i64: 8, 128>}, {transform_indices = @transform_2, window_bounds = array<i64: 8, 128>}, {transform_indices = @transform_3, window_bounds = array<i64: 1, 8, 128>}]} {
    %c0_i32 = arith.constant 0 : i32
    %0 = arith.cmpi eq, %arg1, %c0_i32 : i32
    %1 = arith.extui %0 : i1 to i32
    %c0_i32_0 = arith.constant 0 : i32
    %2 = arith.cmpi ne, %1, %c0_i32_0 : i32
    scf.if %2 {
      %cst_23 = arith.constant 0.000000e+00 : f32
      %39 = vector.broadcast %cst_23 : f32 to vector<8x128xf32>
      %c0_24 = arith.constant 0 : index
      %c0_25 = arith.constant 0 : index
      %40 = vector.load %arg6[%c0_24, %c0_25] : memref<8x128xf32, #tpu.memory_space<vmem>>, vector<8x128xf32>
      tpu.vector_store %arg6[%c0_24, %c0_25], %39 {strides = array<i32>} : memref<8x128xf32, #tpu.memory_space<vmem>>, vector<8x128xf32>,
      %cst_26 = arith.constant 0.000000e+00 : f32
      %41 = vector.broadcast %cst_26 : f32 to vector<8x128xf32>
      %c0_27 = arith.constant 0 : index
      %c0_28 = arith.constant 0 : index
      %42 = vector.load %arg7[%c0_27, %c0_28] : memref<8x128xf32, #tpu.memory_space<vmem>>, vector<8x128xf32>
      tpu.vector_store %arg7[%c0_27, %c0_28], %41 {strides = array<i32>} : memref<8x128xf32, #tpu.memory_space<vmem>>, vector<8x128xf32>,
      %cst_29 = arith.constant 0.000000e+00 : f32
      %43 = vector.broadcast %cst_29 : f32 to vector<8x128xf32>
      %c0_30 = arith.constant 0 : index
      %c0_31 = arith.constant 0 : index
      %44 = vector.load %arg8[%c0_30, %c0_31] : memref<8x128xf32, #tpu.memory_space<vmem>>, vector<8x128xf32>
      tpu.vector_store %arg8[%c0_30, %c0_31], %43 {strides = array<i32>} : memref<8x128xf32, #tpu.memory_space<vmem>>, vector<8x128xf32>,
    } else {
    }
    %c0 = arith.constant 0 : index
    %c0_1 = arith.constant 0 : index
    %3 = vector.load %arg3[%c0, %c0_1] : memref<8x128xf32, #tpu.memory_space<vmem>>, vector<8x128xf32>
    %c0_2 = arith.constant 0 : index
    %c0_3 = arith.constant 0 : index
    %4 = vector.load %arg4[%c0_2, %c0_3] : memref<8x128xf32, #tpu.memory_space<vmem>>, vector<8x128xf32>
    %5 = arith.subf %3, %4 : vector<8x128xf32>
    %6 = math.absf %5 : vector<8x128xf32>
    %7 = arith.mulf %5, %5 : vector<8x128xf32>
    %cst = arith.constant 0.000000e+00 : f32
    %8 = vector.broadcast %cst : f32 to vector<8x128xf32>
    %c1 = arith.constant 1 : index
    %9 = memref.load %arg2[%c1] : memref<5xf32, #tpu.memory_space<smem>>
    %10 = vector.broadcast %9 : f32 to vector<8x128xf32>
    %11 = arith.subf %10, %3 : vector<8x128xf32>
    %cst_4 = arith.constant 0.000000e+00 : f32
    %12 = vector.broadcast %cst_4 : f32 to vector<8x128xf32>
    %13 = arith.maximumf %11, %12 : vector<8x128xf32>
    %14 = arith.addf %8, %13 : vector<8x128xf32>
    %c2 = arith.constant 2 : index
    %15 = memref.load %arg2[%c2] : memref<5xf32, #tpu.memory_space<smem>>
    %16 = vector.broadcast %15 : f32 to vector<8x128xf32>
    %17 = arith.subf %3, %16 : vector<8x128xf32>
    %cst_5 = arith.constant 0.000000e+00 : f32
    %18 = vector.broadcast %cst_5 : f32 to vector<8x128xf32>
    %19 = arith.maximumf %17, %18 : vector<8x128xf32>
    %20 = arith.addf %14, %19 : vector<8x128xf32>
    %c0_6 = arith.constant 0 : index
    %c0_7 = arith.constant 0 : index
    %21 = vector.load %arg6[%c0_6, %c0_7] : memref<8x128xf32, #tpu.memory_space<vmem>>, vector<8x128xf32>
    %22 = vector.shape_cast %6 : vector<8x128xf32> to vector<1x8x128xf32>
    %cst_8 = arith.constant dense<0.000000e+00> : vector<8x128xf32>
    %23 = vector.multi_reduction <add>, %22, %cst_8 [0] : vector<1x8x128xf32> to vector<8x128xf32>
    %24 = arith.addf %21, %23 : vector<8x128xf32>
    %c0_9 = arith.constant 0 : index
    %c0_10 = arith.constant 0 : index
    %25 = vector.load %arg6[%c0_9, %c0_10] : memref<8x128xf32, #tpu.memory_space<vmem>>, vector<8x128xf32>
    tpu.vector_store %arg6[%c0_9, %c0_10], %24 {strides = array<i32>} : memref<8x128xf32, #tpu.memory_space<vmem>>, vector<8x128xf32>,
    %c0_11 = arith.constant 0 : index
    %c0_12 = arith.constant 0 : index
    %26 = vector.load %arg7[%c0_11, %c0_12] : memref<8x128xf32, #tpu.memory_space<vmem>>, vector<8x128xf32>
    %27 = vector.shape_cast %7 : vector<8x128xf32> to vector<1x8x128xf32>
    %cst_13 = arith.constant dense<0.000000e+00> : vector<8x128xf32>
    %28 = vector.multi_reduction <add>, %27, %cst_13 [0] : vector<1x8x128xf32> to vector<8x128xf32>
    %29 = arith.addf %26, %28 : vector<8x128xf32>
    %c0_14 = arith.constant 0 : index
    %c0_15 = arith.constant 0 : index
    %30 = vector.load %arg7[%c0_14, %c0_15] : memref<8x128xf32, #tpu.memory_space<vmem>>, vector<8x128xf32>
    tpu.vector_store %arg7[%c0_14, %c0_15], %29 {strides = array<i32>} : memref<8x128xf32, #tpu.memory_space<vmem>>, vector<8x128xf32>,
    %c0_16 = arith.constant 0 : index
    %c0_17 = arith.constant 0 : index
    %31 = vector.load %arg8[%c0_16, %c0_17] : memref<8x128xf32, #tpu.memory_space<vmem>>, vector<8x128xf32>
    %32 = vector.shape_cast %20 : vector<8x128xf32> to vector<1x8x128xf32>
    %cst_18 = arith.constant dense<0.000000e+00> : vector<8x128xf32>
    %33 = vector.multi_reduction <add>, %32, %cst_18 [0] : vector<1x8x128xf32> to vector<8x128xf32>
    %34 = arith.addf %31, %33 : vector<8x128xf32>
    %c0_19 = arith.constant 0 : index
    %c0_20 = arith.constant 0 : index
    %35 = vector.load %arg8[%c0_19, %c0_20] : memref<8x128xf32, #tpu.memory_space<vmem>>, vector<8x128xf32>
    tpu.vector_store %arg8[%c0_19, %c0_20], %34 {strides = array<i32>} : memref<8x128xf32, #tpu.memory_space<vmem>>, vector<8x128xf32>,
    %c0_i32_21 = arith.constant 0 : i32
    %36 = arith.cmpi eq, %arg1, %c0_i32_21 : i32
    %37 = arith.extui %36 : i1 to i32
    %c0_i32_22 = arith.constant 0 : i32
    %38 = arith.cmpi ne, %37, %c0_i32_22 : i32
    scf.if %38 {
      %c0_23 = arith.constant 0 : index
      %39 = memref.load %arg2[%c0_23] : memref<5xf32, #tpu.memory_space<smem>>
      %cst_24 = arith.constant 9.99999997E-7 : f32
      %cst_25 = arith.constant 1.000000e+00 : f32
      %40 = arith.maximumf %cst_24, %39 : f32
      %41 = arith.minimumf %cst_25, %40 : f32
      %c3 = arith.constant 3 : index
      %42 = memref.load %arg2[%c3] : memref<5xf32, #tpu.memory_space<smem>>
      %43 = arith.mulf %41, %42 : f32
      %c0_26 = arith.constant 0 : index
      %c0_27 = arith.constant 0 : index
      %44 = vector.load %arg6[%c0_26, %c0_27] : memref<8x128xf32, #tpu.memory_space<vmem>>, vector<8x128xf32>
      %45 = vector.broadcast %43 : f32 to vector<8x128xf32>
      %46 = arith.mulf %45, %44 : vector<8x128xf32>
      %cst_28 = arith.constant 1.000000e+00 : f32
      %47 = arith.subf %cst_28, %41 : f32
      %48 = arith.mulf %47, %42 : f32
      %c0_29 = arith.constant 0 : index
      %c0_30 = arith.constant 0 : index
      %49 = vector.load %arg7[%c0_29, %c0_30] : memref<8x128xf32, #tpu.memory_space<vmem>>, vector<8x128xf32>
      %50 = vector.broadcast %48 : f32 to vector<8x128xf32>
      %51 = arith.mulf %50, %49 : vector<8x128xf32>
      %52 = arith.addf %46, %51 : vector<8x128xf32>
      %c4 = arith.constant 4 : index
      %53 = memref.load %arg2[%c4] : memref<5xf32, #tpu.memory_space<smem>>
      %c0_31 = arith.constant 0 : index
      %c0_32 = arith.constant 0 : index
      %54 = vector.load %arg8[%c0_31, %c0_32] : memref<8x128xf32, #tpu.memory_space<vmem>>, vector<8x128xf32>
      %55 = vector.broadcast %53 : f32 to vector<8x128xf32>
      %56 = arith.mulf %55, %54 : vector<8x128xf32>
      %57 = arith.addf %52, %56 : vector<8x128xf32>
      %58 = vector.shape_cast %57 : vector<8x128xf32> to vector<1x8x128xf32>
      %c0_33 = arith.constant 0 : index
      %c0_34 = arith.constant 0 : index
      %c0_35 = arith.constant 0 : index
      %59 = vector.load %arg5[%c0_33, %c0_34, %c0_35] : memref<1x8x128xf32, #tpu.memory_space<vmem>>, vector<1x8x128xf32>
      tpu.vector_store %arg5[%c0_33, %c0_34, %c0_35], %58 {strides = array<i32>} : memref<1x8x128xf32, #tpu.memory_space<vmem>>, vector<1x8x128xf32>,
    } else {
    }
    return
  }
  func.func @transform_0(%arg0: i32, %arg1: i32) -> i32 {
    %c0_i32 = arith.constant 0 : i32
    %c0_i32_0 = arith.constant 0 : i32
    return %c0_i32 : i32
  }
  func.func @transform_1(%arg0: i32, %arg1: i32) -> (i32, i32) {
    %c1_i32 = arith.constant 1 : i32
    %0 = arith.muli %arg0, %c1_i32 : i32
    %1 = arith.addi %0, %arg1 : i32
    %c0_i32 = arith.constant 0 : i32
    %c0_i32_0 = arith.constant 0 : i32
    return %1, %c0_i32 : i32, i32
  }
  func.func @transform_2(%arg0: i32, %arg1: i32) -> (i32, i32) {
    %c1_i32 = arith.constant 1 : i32
    %0 = arith.muli %arg0, %c1_i32 : i32
    %1 = arith.addi %0, %arg1 : i32
    %c0_i32 = arith.constant 0 : i32
    %c0_i32_0 = arith.constant 0 : i32
    return %1, %c0_i32 : i32, i32
  }
  func.func @transform_3(%arg0: i32, %arg1: i32) -> (i32, i32, i32) {
    %c0_i32 = arith.constant 0 : i32
    %c0_i32_0 = arith.constant 0 : i32
    %c0_i32_1 = arith.constant 0 : i32
    return %arg0, %c0_i32, %c0_i32_0 : i32, i32, i32
  }
}

</mosaic_0001>

<llo_original>
// kernel: tpu_custom_call.1
$region0: #{tpu_custom_call.1}
  #allocation0 [shape = 'u32[]', space=smem, size = 0x4, offset = 0x4, fixed_abs, tag = 'smem constant byte address 0x4 - core index']
  #allocation1 [shape = 'u32[144,128]{1,0:T(1,128)}', space=vmem, size = 0x12000, scoped, tag = 'internal scratch']
  #allocation2 [shape = 'f32[8,128]{1,0:T(8,128)}', space=vmem, size = 0x1000, scoped, tag = 'scratch operand']
  #allocation3 [shape = 'f32[8,128]{1,0:T(8,128)}', space=vmem, size = 0x1000, scoped, tag = 'scratch operand']
  #allocation4 [shape = 'f32[8,128]{1,0:T(8,128)}', space=vmem, size = 0x1000, scoped, tag = 'scratch operand']
  %s0 = inlined_call_operand.hbm [shape: f32[5], index: 0, kind: input, shape index: {}]
  %s1 = inlined_call_operand.hbm [shape: f32[16,128], index: 1, kind: input, shape index: {}]
  %s2 = inlined_call_operand.hbm [shape: f32[16,128], index: 2, kind: input, shape index: {}]
  %s3 = inlined_call_operand.hbm [shape: f32[2,8,128], index: 3, kind: output, shape index: {}]
  %s4 = sld [smem:[#allocation0]]
  $region65: #{tpu_custom_call.1} parent=0
    _
  %s6 = ssub.s32 1, %s4
  %s7 = scalar_select 0, %s6, %s4
  $region1: #{tpu_custom_call.1} parent=0
    #allocation5 [shape = 'u8[512]{0}', space=smem, size = 0x200, scoped, tag = 'input window, operand 0, single buffered']
    #allocation6 [shape = 's32[2]{0}', space=sflag, size = 0x8, scoped, tag = 'scoped memory for tpu_custom_call.1']
    #allocation7 [shape = 's32[2]{0}', space=sflag, size = 0x8, scoped, tag = 'scoped memory for tpu_custom_call.1']
    #allocation8 [shape = 's32[2]{0}', space=sflag, size = 0x8, scoped, tag = 'scoped memory for tpu_custom_call.1']
    #allocation9 [shape = 'u8[8192]{0}', space=vmem, size = 0x2000, scoped, tag = 'input window, operand 1']
    #allocation10 [shape = 'u8[8192]{0}', space=vmem, size = 0x2000, scoped, tag = 'input window, operand 2']
    #allocation11 [shape = 's32[2]{0}', space=sflag, size = 0x8, scoped, tag = 'scoped memory for tpu_custom_call.1']
    #allocation12 [shape = 'u8[8192]{0}', space=vmem, size = 0x2000, scoped, tag = 'output window, operand 0']
    %8 = vsyncpa [#allocation8], 0
    %9 = vsyncpa [#allocation6], 0
    %s10 = scalar_lea.sflag [#allocation6], 1
    %11 = vsyncpa %s10, 0
    %12 = vsyncpa [#allocation11], 0
    %s13 = scalar_lea.sflag [#allocation11], 1
    %14 = vsyncpa %s13, 0
    %15 = vsyncpa [#allocation7], 0
    %s16 = scalar_lea.sflag [#allocation7], 1
    %17 = vsyncpa %s16, 0
    loop: start=0, step=1, limit=4
    $region2: #{tpu_custom_call.1} parent=1 // loop_pre_header
      _
    $region3: #{tpu_custom_call.1} parent=1 // loop_header
      %s19 = sphi 0, %s23
      %p20 = scmp.ge.s32.totalorder %s19, 4
      %s26 = sphi 0, %s38
      %s27 = sphi 0, %s34
      %s28 = sphi 0, %s26
      %s29 = sphi 0, %s27
      %s30 = sphi 0, %s28
      %s31 = sphi 0, %s29
      %s39 = sphi 0, %s39
      %s41 = sphi 0, %s39
      %s42 = sphi 0, %s41
      %s56 = sphi 0, %s42
      %s64 = sphi 0, %s66
      %s67 = sphi 0, %s64
      %s68 = sphi 0, %s67
      %s84 = sphi 0, %s68
      %s92 = sphi 0, %s94
      %s95 = sphi 0, %s92
      %s96 = sphi 0, %s95
      %s112 = sphi 0, %s96
      %s118 = sphi 0, %s120
      %s121 = sphi 0, %s118
      %s122 = sphi 0, %s121
      %s138 = sphi 0, %s122
    $region4: #{tpu_custom_call.1} parent=1 // loop_header_branch
      %22 = sbr.rel (%p20) target = $region8
    $region5: #{tpu_custom_call.1} parent=1 // loop_body
      %s24 = ssub.s32 %s19, 1
      %s25 = ssub.s32 %s19, 2
      %s32 = sadd.s32 1, %s27
      %p33 = scmp.ge.s32.totalorder %s32, 1
      %s34 = scalar_select %p33, 0, %s32
      %s35 = sadd.s32 1, %s26
      %s36 = scalar_select %p33, %s35, %s26
      %p37 = scmp.ge.s32.totalorder %s36, 2
      %s38 = scalar_select %p37, 0, %s36
      %s40 = sadd.s32 %s39, 1
      %p43 = scmp.eq.s32.totalorder %s19, 1
      %p44 = scmp.ne.s32.totalorder %s39, %s41
      %p45 = scmp.eq.s32.totalorder %s19, 0
      %p46 = por %p44, %p45
      %p47 = scmp.ne.s32.totalorder %s39, %s41
      %p48 = scmp.eq.s32.totalorder %s24, 1
      %p49 = por %p47, %p48
      %p50 = scmp.ne.s32.totalorder %s41, %s42
      %p51 = scmp.eq.s32.totalorder %s24, 0
      %p52 = por %p50, %p51
      %p53 = scmp.ne.s32.totalorder %s41, %s42
      %p54 = scmp.eq.s32.totalorder %s25, 1
      %p55 = por %p53, %p54
      %p57 = scmp.ne.s32.totalorder %s42, %s56
      %p58 = scmp.eq.s32.totalorder %s25, 0
      %p59 = por %p57, %p58
      %s60 = sadd.s32 %s26, %s27
      %s61 = sadd.s32 %s38, %s34
      %s62 = ssub.s32 %s60, %s61
      %p63 = scmp.eq.s32.totalorder %s62, 0
      %s65 = sadd.s32 %s64, 1
      %s66 = scalar_select %p63, %s64, %s65
      %p69 = pneg %p63
      %p70 = scmp.eq.s32.totalorder %s19, 1
      %p71 = por %p69, %p70
      %p72 = scmp.ne.s32.totalorder %s64, %s67
      %p73 = scmp.eq.s32.totalorder %s19, 0
      %p74 = por %p72, %p73
      %p75 = scmp.ne.s32.totalorder %s64, %s67
      %p76 = scmp.eq.s32.totalorder %s24, 1
      %p77 = por %p75, %p76
      %p78 = scmp.ne.s32.totalorder %s67, %s68
      %p79 = scmp.eq.s32.totalorder %s24, 0
      %p80 = por %p78, %p79
      %p81 = scmp.ne.s32.totalorder %s67, %s68
      %p82 = scmp.eq.s32.totalorder %s25, 1
      %p83 = por %p81, %p82
      %p85 = scmp.ne.s32.totalorder %s68, %s84
      %p86 = scmp.eq.s32.totalorder %s25, 0
      %p87 = por %p85, %p86
      %s88 = sadd.s32 %s26, %s27
      %s89 = sadd.s32 %s38, %s34
      %s90 = ssub.s32 %s88, %s89
      %p91 = scmp.eq.s32.totalorder %s90, 0
      %s93 = sadd.s32 %s92, 1
      %s94 = scalar_select %p91, %s92, %s93
      %p97 = pneg %p91
      %p98 = scmp.eq.s32.totalorder %s19, 1
      %p99 = por %p97, %p98
      %p100 = scmp.ne.s32.totalorder %s92, %s95
      %p101 = scmp.eq.s32.totalorder %s19, 0
      %p102 = por %p100, %p101
      %p103 = scmp.ne.s32.totalorder %s92, %s95
      %p104 = scmp.eq.s32.totalorder %s24, 1
      %p105 = por %p103, %p104
      %p106 = scmp.ne.s32.totalorder %s95, %s96
      %p107 = scmp.eq.s32.totalorder %s24, 0
      %p108 = por %p106, %p107
      %p109 = scmp.ne.s32.totalorder %s95, %s96
      %p110 = scmp.eq.s32.totalorder %s25, 1
      %p111 = por %p109, %p110
      %p113 = scmp.ne.s32.totalorder %s96, %s112
      %p114 = scmp.eq.s32.totalorder %s25, 0
      %p115 = por %p113, %p114
      %s116 = ssub.s32 %s26, %s38
      %p117 = scmp.eq.s32.totalorder %s116, 0
      %s119 = sadd.s32 %s118, 1
      %s120 = scalar_select %p117, %s118, %s119
      %p123 = pneg %p117
      %p124 = scmp.eq.s32.totalorder %s19, 1
      %p125 = por %p123, %p124
      %p126 = scmp.ne.s32.totalorder %s118, %s121
      %p127 = scmp.eq.s32.totalorder %s19, 0
      %p128 = por %p126, %p127
      %p129 = scmp.ne.s32.totalorder %s118, %s121
      %p130 = scmp.eq.s32.totalorder %s24, 1
      %p131 = por %p129, %p130
      %p132 = scmp.ne.s32.totalorder %s121, %s122
      %p133 = scmp.eq.s32.totalorder %s24, 0
      %p134 = por %p132, %p133
      %p135 = scmp.ne.s32.totalorder %s121, %s122
      %p136 = scmp.eq.s32.totalorder %s25, 1
      %p137 = por %p135, %p136
      %p139 = scmp.ne.s32.totalorder %s122, %s138
      %p140 = scmp.eq.s32.totalorder %s25, 0
      %p141 = por %p139, %p140
      %p142 = scmp.le.s32.totalorder 1, %s19
      %p143 = scmp.lt.s32.totalorder %s19, 3
      %p144 = pnand %p142, %p143
      %p145 = pneg %p144
      // Predicated region
      $region9: #{tpu_custom_call.1} parent=5 // pred_check
        _
      $region10: #{tpu_custom_call.1} parent=5 // pred_check_branch
        %147 = sbr.rel (%p144) target = $region12
      $region11: #{tpu_custom_call.1} parent=5 // pred_region
        %s148 = ssub.s32 %s19, 1
        // Predicated region
        $region13: #{tpu_custom_call.1} parent=11 // pred_check
          %p149 = pneg %p52
        $region14: #{tpu_custom_call.1} parent=11 // pred_check_branch
          %151 = sbr.rel (%p149) target = $region16
        $region15: #{tpu_custom_call.1} parent=11 // pred_region
          %s153 = ssub.s32 16, 16
          %154 = vsyncadd [#allocation8], %s153
          %157 = dma.hbm_to_smem %s0, 16, [#allocation5], [#allocation8]
        $region16: #{tpu_custom_call.1} parent=11 // pred_fallthru
          _
      $region12: #{tpu_custom_call.1} parent=5 // pred_fallthru
        _
      %p158 = scmp.lt.s32.totalorder %s19, 2
      // Predicated region
      $region17: #{tpu_custom_call.1} parent=5 // pred_check
        %p159 = pneg %p158
      $region18: #{tpu_custom_call.1} parent=5 // pred_check_branch
        %161 = sbr.rel (%p159) target = $region20
      $region19: #{tpu_custom_call.1} parent=5 // pred_region
        // Predicated region
        $region21: #{tpu_custom_call.1} parent=19 // pred_check
          %p162 = pneg %p74
        $region22: #{tpu_custom_call.1} parent=19 // pred_check_branch
          %164 = sbr.rel (%p162) target = $region24
        $region23: #{tpu_custom_call.1} parent=19 // pred_region
          %s165 = sand.u32 %s64, 1
          %s166 = scalar_lea.sflag [#allocation6], %s165
          %s167 = sand.u32 %s64, 1
          %s168 = smul.addr %s167, 8
          %s169 = scalar_lea.vmem [#allocation9], %s168
          %s170 = sadd.s32 %s26, %s27
          %s172 = ssub.s32 128, 128
          %173 = vsyncadd %s166, %s172
          %s174 = smul.addr %s170, 128
          %s175 = scalar_lea.hbm %s1, %s174
          %s177 = sshll.u32 %s169, 4
          %s178 = int_to_ptr.vmem [resolvable:$true] %s177
          %180 = dma.hbm_to_vmem [thread:$0]  %s175, 128, %s178, %s166
        $region24: #{tpu_custom_call.1} parent=19 // pred_fallthru
          _
        // Predicated region
        $region25: #{tpu_custom_call.1} parent=19 // pred_check
          %p181 = pneg %p102
        $region26: #{tpu_custom_call.1} parent=19 // pred_check_branch
          %183 = sbr.rel (%p181) target = $region28
        $region27: #{tpu_custom_call.1} parent=19 // pred_region
          %s184 = sand.u32 %s92, 1
          %s185 = scalar_lea.sflag [#allocation11], %s184
          %s186 = sand.u32 %s92, 1
          %s187 = smul.addr %s186, 8
          %s188 = scalar_lea.vmem [#allocation10], %s187
          %s189 = sadd.s32 %s26, %s27
          %s191 = ssub.s32 128, 128
          %192 = vsyncadd %s185, %s191
          %s193 = smul.addr %s189, 128
          %s194 = scalar_lea.hbm %s2, %s193
          %s196 = sshll.u32 %s188, 4
          %s197 = int_to_ptr.vmem [resolvable:$true] %s196
          %199 = dma.hbm_to_vmem [thread:$0]  %s194, 128, %s197, %s185
        $region28: #{tpu_custom_call.1} parent=19 // pred_fallthru
          _
      $region20: #{tpu_custom_call.1} parent=5 // pred_fallthru
        _
      %p200 = scmp.le.s32.totalorder 1, %s19
      %p201 = scmp.lt.s32.totalorder %s19, 3
      %p202 = pnand %p200, %p201
      %p203 = pneg %p202
      // Predicated region
      $region29: #{tpu_custom_call.1} parent=5 // pred_check
        _
      $region30: #{tpu_custom_call.1} parent=5 // pred_check_branch
        %205 = sbr.rel (%p202) target = $region32
      $region31: #{tpu_custom_call.1} parent=5 // pred_region
        %s206 = ssub.s32 %s19, 1
        // Predicated region
        $region33: #{tpu_custom_call.1} parent=31 // pred_check
          %p207 = pneg %p52
        $region34: #{tpu_custom_call.1} parent=31 // pred_check_branch
          %209 = sbr.rel (%p207) target = $region36
        $region35: #{tpu_custom_call.1} parent=31 // pred_region
          %210 = dma.done [#allocation8], 16
        $region36: #{tpu_custom_call.1} parent=31 // pred_fallthru
          _
        %s211 = sand.u32 %s67, 1
        %s212 = scalar_lea.sflag [#allocation6], %s211
        %s213 = sand.u32 %s67, 1
        %s214 = smul.addr %s213, 8
        %s215 = scalar_lea.vmem [#allocation9], %s214
        // Predicated region
        $region37: #{tpu_custom_call.1} parent=31 // pred_check
          %p216 = pneg %p80
        $region38: #{tpu_custom_call.1} parent=31 // pred_check_branch
          %218 = sbr.rel (%p216) target = $region40
        $region39: #{tpu_custom_call.1} parent=31 // pred_region
          %219 = dma.done %s212, 128
        $region40: #{tpu_custom_call.1} parent=31 // pred_fallthru
          _
        %s220 = sand.u32 %s95, 1
        %s221 = scalar_lea.sflag [#allocation11], %s220
        %s222 = sand.u32 %s95, 1
        %s223 = smul.addr %s222, 8
        %s224 = scalar_lea.vmem [#allocation10], %s223
        // Predicated region
        $region41: #{tpu_custom_call.1} parent=31 // pred_check
          %p225 = pneg %p108
        $region42: #{tpu_custom_call.1} parent=31 // pred_check_branch
          %227 = sbr.rel (%p225) target = $region44
        $region43: #{tpu_custom_call.1} parent=31 // pred_region
          %228 = dma.done %s221, 128
        $region44: #{tpu_custom_call.1} parent=31 // pred_fallthru
          _
        %229 = sfence
        %p230 = pneg %p52
        %p231 = pneg %p49
        %s232 = sand.u32 %s67, 1
        %s233 = scalar_lea.sflag [#allocation6], %s232
        %s234 = sand.u32 %s67, 1
        %s235 = smul.addr %s234, 8
        %s236 = scalar_lea.vmem [#allocation9], %s235
        %p237 = pneg %p80
        %p238 = pneg %p77
        %s239 = sand.u32 %s95, 1
        %s240 = scalar_lea.sflag [#allocation11], %s239
        %s241 = sand.u32 %s95, 1
        %s242 = smul.addr %s241, 8
        %s243 = scalar_lea.vmem [#allocation10], %s242
        %p244 = pneg %p108
        %p245 = pneg %p105
        %p246 = pneg %p134
        %p247 = pneg %p131
        %s248 = sand.u32 %s121, 1
        %s249 = scalar_lea.sflag [#allocation7], %s248
        %s250 = sand.u32 %s121, 1
        %s251 = smul.addr %s250, 8
        %s252 = scalar_lea.vmem [#allocation12], %s251
        %s253 = sadd.s32 %s28, %s29
        %s254 = sadd.s32 %s28, %s29
        %p255 = scmp.eq.s32.totalorder %s29, 0
        // Predicated region
        $region45: #{tpu_custom_call.1} parent=31 // pred_check
          %p256 = pneg %p255
        $region46: #{tpu_custom_call.1} parent=31 // pred_check_branch
          %258 = sbr.rel (%p256) target = $region48
        $region47: #{tpu_custom_call.1} parent=31 // pred_region
          %259 = vst [vmem:[#allocation2] sm:$0xff] 0.0
          %260 = vst [vmem:[#allocation3] sm:$0xff] 0.0
          %261 = vst [vmem:[#allocation4] sm:$0xff] 0.0
        $region48: #{tpu_custom_call.1} parent=31 // pred_fallthru
          _
        %v262 = vld [vmem:[%s215] sm:$0xff]
        %v263 = vld [vmem:[%s224] sm:$0xff]
        %v264 = vsub.f32 %v262, %v263
        %v265 = vand.u32 2147483647, %v264
        %v266 = vmul.f32 %v264, %v264
        %s267 = sld [smem:[#allocation5 + $0x1]]
        %v268 = vstv %s267
        %v269 = vsub.f32 %v268, %v262
        %v270 = vmax.f32 %v269, 0.0
        %v271 = vadd.f32 %v270, 0.0
        %s272 = sld [smem:[#allocation5 + $0x2]]
        %v273 = vstv %s272
        %v274 = vsub.f32 %v262, %v273
        %v275 = vmax.f32 %v274, 0.0
        %v276 = vadd.f32 %v271, %v275
        %v277 = vld [vmem:[#allocation2] sm:$0xff]
        %v278 = vadd.f32 %v265, 0.0
        %v279 = vadd.f32 %v277, %v278
        %280 = vst [vmem:[#allocation2] sm:$0xff] %v279
        %v281 = vld [vmem:[#allocation3] sm:$0xff]
        %v282 = vadd.f32 %v266, 0.0
        %v283 = vadd.f32 %v281, %v282
        %284 = vst [vmem:[#allocation3] sm:$0xff] %v283
        %v285 = vld [vmem:[#allocation4] sm:$0xff]
        %v286 = vadd.f32 %v276, 0.0
        %v287 = vadd.f32 %v285, %v286
        %288 = vst [vmem:[#allocation4] sm:$0xff] %v287
        // Predicated region
        $region49: #{tpu_custom_call.1} parent=31 // pred_check
          %p289 = pneg %p255
        $region50: #{tpu_custom_call.1} parent=31 // pred_check_branch
          %291 = sbr.rel (%p289) target = $region52
        $region51: #{tpu_custom_call.1} parent=31 // pred_region
          %s292 = sld [smem:[#allocation5]]
          %s293 = smax.f32 %s292, 1e-06
          %s294 = smin.f32 %s293, 1.0
          %s295 = sld [smem:[#allocation5 + $0x3]]
          %s296 = smul.f32 %s294, %s295
          %v297 = vld [vmem:[#allocation2] sm:$0xff]
          %v298 = vstv %s296
          %v299 = vmul.f32 %v298, %v297
          %s300 = ssub.f32 1.0, %s294
          %s301 = smul.f32 %s300, %s295
          %v302 = vld [vmem:[#allocation3] sm:$0xff]
          %v303 = vstv %s301
          %v304 = vmul.f32 %v303, %v302
          %v305 = vadd.f32 %v299, %v304
          %s306 = sld [smem:[#allocation5 + $0x4]]
          %v307 = vld [vmem:[#allocation4] sm:$0xff]
          %v308 = vstv %s306
          %v309 = vmul.f32 %v308, %v307
          %v310 = vadd.f32 %v305, %v309
          %311 = vst [vmem:[%s252] sm:$0xff] %v310
        $region52: #{tpu_custom_call.1} parent=31 // pred_fallthru
          _
        %s312 = sand.u32 %s121, 1
        %s313 = scalar_lea.sflag [#allocation7], %s312
        %s314 = sand.u32 %s121, 1
        %s315 = smul.addr %s314, 8
        %s316 = scalar_lea.vmem [#allocation12], %s315
        // Predicated region
        $region53: #{tpu_custom_call.1} parent=31 // pred_check
          %p317 = pneg %p131
        $region54: #{tpu_custom_call.1} parent=31 // pred_check_branch
          %319 = sbr.rel (%p317) target = $region56
        $region55: #{tpu_custom_call.1} parent=31 // pred_region
          %s321 = ssub.s32 128, 128
          %322 = vsyncadd %s313, %s321
          %s323 = smul.addr %s28, 128
          %s324 = scalar_lea.hbm %s3, %s323
          %s326 = sshll.u32 %s316, 4
          %s327 = int_to_ptr.vmem [resolvable:$true] %s326
          %329 = dma.vmem_to_hbm [thread:$0]  %s327, 128, %s324, %s313
        $region56: #{tpu_custom_call.1} parent=31 // pred_fallthru
          _
      $region32: #{tpu_custom_call.1} parent=5 // pred_fallthru
        _
      %p330 = scmp.le.s32.totalorder 2, %s19
      // Predicated region
      $region57: #{tpu_custom_call.1} parent=5 // pred_check
        %p331 = pneg %p330
      $region58: #{tpu_custom_call.1} parent=5 // pred_check_branch
        %333 = sbr.rel (%p331) target = $region60
      $region59: #{tpu_custom_call.1} parent=5 // pred_region
        %s334 = ssub.s32 %s19, 2
        // Predicated region
        $region61: #{tpu_custom_call.1} parent=59 // pred_check
          %p335 = pneg %p137
        $region62: #{tpu_custom_call.1} parent=59 // pred_check_branch
          %337 = sbr.rel (%p335) target = $region64
        $region63: #{tpu_custom_call.1} parent=59 // pred_region
          %s338 = sand.u32 %s122, 1
          %s339 = scalar_lea.sflag [#allocation7], %s338
          %s340 = sand.u32 %s122, 1
          %s341 = smul.addr %s340, 8
          %s342 = scalar_lea.vmem [#allocation12], %s341
          %343 = dma.done %s339, 128
        $region64: #{tpu_custom_call.1} parent=59 // pred_fallthru
          _
      $region60: #{tpu_custom_call.1} parent=5 // pred_fallthru
        _
    $region6: #{tpu_custom_call.1} parent=1 // loop_footer
      %s23 = sadd.s32 1, %s19
    $region7: #{tpu_custom_call.1} parent=1 // loop_footer_branch
      %18 = sbr.rel target = $region3
    $region8: #{tpu_custom_call.1} parent=1 // loop_exit
      _
    %344 = vsyncpa [#allocation6], 1
    %s345 = scalar_lea.sflag [#allocation6], 1
    %346 = vsyncpa %s345, 1
    %347 = vsyncpa [#allocation11], 1
    %s348 = scalar_lea.sflag [#allocation11], 1
    %349 = vsyncpa %s348, 1
    %350 = vsyncpa [#allocation7], 1
    %s351 = scalar_lea.sflag [#allocation7], 1
    %352 = vsyncpa %s351, 1
    %353 = vsyncpa [#allocation8], 1
    %s354 = scalar_lea.sflag [#allocation8], 1
    %355 = vsyncpa %s354, 1

</llo_original>
